<compile_context>
chip_gen: v6e
topology: v6e:2x2x1
jax: 0.10.0
libtpu: 0.0.40
codegen_flags: <defaults>
</compile_context>

<pallas_src>
import functools
import math

import numpy as np

import jax
import jax.numpy as jnp
from jax import lax
from jax.experimental import pallas as pl
from jax.experimental.pallas import tpu as pltpu

# ----------------------------- hyperparameters ------------------------------
D_MODEL = 32
D_ATTENTION = 16
D_FEEDFORWARD = 64
NHEAD = 4
D_MODEL_HEAD = D_MODEL // NHEAD          # 8
D_ATTENTION_HEAD = D_ATTENTION // NHEAD  # 4
BATCH = 2
SEQ = 8
RESIDUAL_SCALE = 0.5
LN_EPS = 1e-5

SLAB_COLS = 128                          # lane-dense slab width


# --------------------------------- kernel -----------------------------------
def _encoder_layer_kernel(
    x_ref,        # VMEM (B*S, D)           activations
    slab_ref,     # VMEM (168, 128)         packed weights + biases + masks
    o_ref,        # VMEM (B*S, D)
    *, batch, seq, nhead, d_model, d_att, d_ff, residual_scale,
):
    BS = batch * seq
    D = d_model
    c_qkv = 2 * d_att + D                 # 64  width of fused QKV weight
    col2 = c_qkv                          # 64  second column band (W1 / W_cat)
    r_w2 = D                              # 32  W2 row offset
    r_bias = D + d_ff                     # 96  bias block row offset
    r_mask = r_bias + 8                   # 104 mask block row offset
    bw = max(c_qkv, d_ff, D)              # 64  bias row width

    x = x_ref[...]                                            # (BS, D) f32

    # ---- slab unpack (all offsets static, sublane-multiple-of-8 aligned) ----
    w_qkv = slab_ref[0:D, 0:c_qkv]                            # (32, 64)  [Q*s | K | V]
    w1 = slab_ref[0:D, col2:col2 + d_ff]                      # (32, 64)
    w2 = slab_ref[r_w2:r_w2 + d_ff, 0:D]                      # (64, 32)
    w_cat = slab_ref[r_w2:r_w2 + D, col2:col2 + D]            # (32, 32)
    bias = slab_ref[r_bias:r_bias + 8, 0:bw]                  # (8, 64)
    masks = slab_ref[r_mask:r_mask + nhead * BS, 0:d_att + BS + D]   # (64, 64)

    # bias rows: 0 n1w, 1 n1b, 2 b_qkv, 3 b_cat, 4 n2w, 5 n2b, 6 b1, 7 b2
    n1w, n1b = bias[0:1, 0:D], bias[1:2, 0:D]
    b_qkv = bias[2:3, 0:c_qkv]
    b_cat = bias[3:4, 0:D]
    n2w, n2b = bias[4:5, 0:D], bias[5:6, 0:D]
    b1 = bias[6:7, 0:d_ff]
    b2 = bias[7:8, 0:D]

    # mask columns: [head_q_mask (d_att) | batch additive mask (BS) | head_o_mask (D)]
    head_q_mask = masks[:, 0:d_att]                           # (nhead*BS, d_att) 0/1
    batch_mask = masks[:, d_att:d_att + BS]                   # (nhead*BS, BS)   0/-1e30
    head_o_mask = masks[:, d_att + BS:d_att + BS + D]         # (nhead*BS, D)    0/1

    def layernorm(z, w, b):
        mu = jnp.mean(z, axis=-1, keepdims=True)
        d = z - mu
        var = jnp.mean(d * d, axis=-1, keepdims=True)
        return d * lax.rsqrt(var + LN_EPS) * w + b

    # ---- multi-head self attention branch ----
    xn = layernorm(x, n1w, n1b)
    # fused Q|K|V projection (1/sqrt(d_head) already folded into the Q slice)
    qkv = jnp.dot(xn, w_qkv, preferred_element_type=jnp.float32) + b_qkv      # (BS, 64)
    q = qkv[:, 0:d_att]                                                       # (BS, 16)
    k = qkv[:, d_att:2 * d_att]                                               # (BS, 16)
    v = qkv[:, 2 * d_att:2 * d_att + D]                                       # (BS, 32)

    # one score matmul for all heads: sublane-tile Q nhead x, zero the columns
    # outside each block's head, contract dim 1 of both against the full K.
    q_tiled = jnp.concatenate([q] * nhead, axis=0) * head_q_mask              # (nhead*BS, d_att)
    dn = (((1,), (1,)), ((), ()))                                             # q @ k.T
    s_all = lax.dot_general(q_tiled, k, dn,
                            preferred_element_type=jnp.float32)               # (nhead*BS, BS)
    s_all = s_all + batch_mask            # keep attention within each batch element

    # single vectorized, numerically stable softmax over all heads / batches
    m = jnp.max(s_all, axis=-1, keepdims=True)
    e = jnp.exp(s_all - m)
    p_all = e / jnp.sum(e, axis=-1, keepdims=True)                            # (nhead*BS, BS)

    # P @ V_full, per-head-block column mask, output projection, head-block sum
    o_all = jnp.dot(p_all, v, preferred_element_type=jnp.float32)             # (nhead*BS, D)
    o_all = o_all * head_o_mask
    proj = jnp.dot(o_all, w_cat, preferred_element_type=jnp.float32)          # (nhead*BS, D)
    cat = proj[0:BS, :]
    for h in range(1, nhead):
        cat = cat + proj[h * BS:(h + 1) * BS, :]                              # (BS, D)

    x = x + (cat + b_cat) * residual_scale

    # ---- MLP branch ----
    xn2 = layernorm(x, n2w, n2b)
    h1 = jnp.dot(xn2, w1, preferred_element_type=jnp.float32) + b1            # (BS, d_ff)
    # GELU, tanh approximation (matches nn.GELU(approximate='tanh'))
    k0 = 0.7978845608028654  # sqrt(2/pi)
    g = 0.5 * h1 * (1.0 + jnp.tanh(k0 * (h1 + 0.044715 * h1 * h1 * h1)))
    h2 = jnp.dot(g, w2, preferred_element_type=jnp.float32) + b2              # (BS, D)
    x = x + h2 * residual_scale

    o_ref[...] = x


# ------------------------------ mask construction ----------------------------
def _make_masks(batch, seq):
    """Compile-time masks (numpy), folded into the parameter slab."""
    BS = batch * seq
    r = np.arange(NHEAD * BS)
    h_of_row = r // BS
    q_of_row = r % BS

    cq = np.arange(D_ATTENTION)
    head_q_mask = (cq[None, :] // D_ATTENTION_HEAD == h_of_row[:, None]).astype(np.float32)

    ck = np.arange(BS)
    same_batch = (q_of_row[:, None] // seq) == (ck[None, :] // seq)
    batch_mask = np.where(same_batch, 0.0, -1e30).astype(np.float32)

    co = np.arange(D_MODEL)
    head_o_mask = (co[None, :] // D_MODEL_HEAD == h_of_row[:, None]).astype(np.float32)

    return np.concatenate([head_q_mask, batch_mask, head_o_mask], axis=1)  # (NHEAD*BS, 64)


# ------------------------------ param packing --------------------------------
def pack_params(params, batch, seq):
    """Pack the 16 logical parameter tensors + the static masks into ONE slab.

    Layout ((168, 128) f32 for batch=2, seq=8):
      rows [0,   32) cols [0,  64)  W_qkv = [Wq/sqrt(dh) | Wk | Wv]
      rows [0,   32) cols [64,128)  W1
      rows [32,  96) cols [0,  32)  W2
      rows [32,  64) cols [64, 96)  W_cat
      rows [96, 104) cols [0,  64)  bias rows (n1w,n1b,b_qkv,b_cat,n2w,n2b,b1,b2)
      rows [104,168) cols [0,  64)  masks [head_q | batch additive | head_o]
    """
    inv_sqrt = 1.0 / math.sqrt(D_ATTENTION_HEAD)
    BS = batch * seq
    c_qkv = 2 * D_ATTENTION + D_MODEL
    col2 = c_qkv
    r_w2 = D_MODEL
    r_bias = D_MODEL + D_FEEDFORWARD
    r_mask = r_bias + 8
    rows = r_mask + NHEAD * BS

    wqkv = jnp.concatenate(
        [params["wq_t"] * inv_sqrt, params["wk_t"], params["wv_t"]], axis=1)   # (D, 64)
    bqkv = jnp.concatenate(
        [params["bq"][0] * inv_sqrt, params["bk"][0], params["bv"][0]])        # (64,)

    bw = max(c_qkv, D_FEEDFORWARD, D_MODEL)

    def pad_row(v):
        v = jnp.asarray(v, jnp.float32).reshape(-1)
        return jnp.pad(v, (0, bw - v.shape[0]))

    bias = jnp.stack([
        pad_row(params["n1w"][0]), pad_row(params["n1b"][0]),
        pad_row(bqkv), pad_row(params["bc"][0]),
        pad_row(params["n2w"][0]), pad_row(params["n2b"][0]),
        pad_row(params["b1"][0]), pad_row(params["b2"][0]),
    ], axis=0)                                                                 # (8, 64)

    masks = jnp.asarray(_make_masks(batch, seq))                               # (nhead*BS, 64)

    slab = jnp.zeros((rows, SLAB_COLS), jnp.float32)
    slab = slab.at[0:D_MODEL, 0:c_qkv].set(wqkv)
    slab = slab.at[0:D_MODEL, col2:col2 + D_FEEDFORWARD].set(params["w1_t"])
    slab = slab.at[r_w2:r_w2 + D_FEEDFORWARD, 0:D_MODEL].set(params["w2_t"])
    slab = slab.at[r_w2:r_w2 + D_MODEL, col2:col2 + D_MODEL].set(params["wc_t"])
    slab = slab.at[r_bias:r_bias + 8, 0:bw].set(bias)
    slab = slab.at[r_mask:r_mask + NHEAD * BS,
                   0:D_ATTENTION + BS + D_MODEL].set(masks)
    return slab


# -------------------------------- wrapper ------------------------------------
def build_forward(batch, seq, residual_scale):
    """Build a jitted forward: (x (B,S,D), slab) -> {'x': (B,S,D)}."""
    BS = batch * seq
    kernel = functools.partial(
        _encoder_layer_kernel,
        batch=batch, seq=seq, nhead=NHEAD, d_model=D_MODEL,
        d_att=D_ATTENTION, d_ff=D_FEEDFORWARD,
        residual_scale=float(residual_scale),
    )

    call = pl.pallas_call(
        kernel,
        out_shape=jax.ShapeDtypeStruct((BS, D_MODEL), jnp.float32),
        in_specs=[pl.BlockSpec(memory_space=pltpu.MemorySpace.VMEM),
                  pl.BlockSpec(memory_space=pltpu.MemorySpace.VMEM)],
        out_specs=pl.BlockSpec(memory_space=pltpu.MemorySpace.VMEM),
    )

    @jax.jit
    def forward(x, slab):
        out2d = call(x.reshape(BS, D_MODEL), slab)
        return {"x": out2d.reshape(batch, seq, D_MODEL)}

    return forward


# ------------------------- deterministic parameter init ----------------------
def init_params(key):
    ks = jax.random.split(key, 12)

    def xavier(k, shape):  # shape = (out, in) torch-style
        fan_out, fan_in = shape
        bound = math.sqrt(6.0 / (fan_in + fan_out))
        return jax.random.uniform(k, shape, jnp.float32, -bound, bound)

    def linear_default(kw, kb, out_dim, in_dim):
        bound = 1.0 / math.sqrt(in_dim)
        w = jax.random.uniform(kw, (out_dim, in_dim), jnp.float32, -bound, bound)
        b = jax.random.uniform(kb, (out_dim,), jnp.float32, -bound, bound)
        return w, b

    # q, k, v: xavier_uniform_ weights, default-init biases
    wq = xavier(ks[0], (D_ATTENTION, D_MODEL))
    wk = xavier(ks[1], (D_ATTENTION, D_MODEL))
    wv = xavier(ks[2], (D_MODEL, D_MODEL))
    _, bq = linear_default(ks[3], ks[3], D_ATTENTION, D_MODEL)
    _, bk = linear_default(ks[4], ks[4], D_ATTENTION, D_MODEL)
    _, bv = linear_default(ks[5], ks[5], D_MODEL, D_MODEL)
    wc, bc = linear_default(ks[6], ks[7], D_MODEL, D_MODEL)
    w1, b1 = linear_default(ks[8], ks[9], D_FEEDFORWARD, D_MODEL)
    w2, b2 = linear_default(ks[10], ks[11], D_MODEL, D_FEEDFORWARD)

    params = {
        "n1w": jnp.ones((1, D_MODEL), jnp.float32),
        "n1b": jnp.zeros((1, D_MODEL), jnp.float32),
        "wq_t": wq.T, "bq": bq[None, :],
        "wk_t": wk.T, "bk": bk[None, :],
        "wv_t": wv.T, "bv": bv[None, :],
        "wc_t": wc.T, "bc": bc[None, :],
        "n2w": jnp.ones((1, D_MODEL), jnp.float32),
        "n2b": jnp.zeros((1, D_MODEL), jnp.float32),
        "w1_t": w1.T, "b1": b1[None, :],
        "w2_t": w2.T, "b2": b2[None, :],
    }
    return params


# ------------------------------ reference (plain JAX) ------------------------
def reference(x, p, scale):
    def ln(z, w, b):
        mu = jnp.mean(z, -1, keepdims=True)
        var = jnp.mean((z - mu) ** 2, -1, keepdims=True)
        return (z - mu) / jnp.sqrt(var + LN_EPS) * w + b

    B, S, _ = x.shape
    xn = ln(x, p["n1w"], p["n1b"])
    q = xn @ p["wq_t"] + p["bq"]
    k = xn @ p["wk_t"] + p["bk"]
    v = xn @ p["wv_t"] + p["bv"]
    q = q.reshape(B, S, NHEAD, D_ATTENTION_HEAD).transpose(0, 2, 1, 3)
    k = k.reshape(B, S, NHEAD, D_ATTENTION_HEAD).transpose(0, 2, 1, 3)
    v = v.reshape(B, S, NHEAD, D_MODEL_HEAD).transpose(0, 2, 1, 3)
    s = jnp.einsum("bhqd,bhkd->bhqk", q, k) / math.sqrt(D_ATTENTION_HEAD)
    a = jax.nn.softmax(s, axis=-1)
    o = jnp.einsum("bhqk,bhkd->bhqd", a, v).transpose(0, 2, 1, 3).reshape(B, S, D_MODEL)
    x = x + (o @ p["wc_t"] + p["bc"]) * scale
    xn2 = ln(x, p["n2w"], p["n2b"])
    h1 = xn2 @ p["w1_t"] + p["b1"]
    g = 0.5 * h1 * (1.0 + jnp.tanh(0.7978845608028654 * (h1 + 0.044715 * h1 ** 3)))
    x = x + (g @ p["w2_t"] + p["b2"]) * scale
    return x


# ---------------------------------- main -------------------------------------
if __name__ == "__main__":
    key = jax.random.PRNGKey(0)
    k_x, k_p = jax.random.split(key)
    x = jax.random.normal(k_x, (BATCH, SEQ, D_MODEL), jnp.float32)
    params = init_params(k_p)

    # Pack params + static masks once (device-resident); build jitted forward.
    slab = jax.block_until_ready(pack_params(params, BATCH, SEQ))
    forward = build_forward(BATCH, SEQ, RESIDUAL_SCALE)

    out = forward(x, slab)["x"]
    out = jax.block_until_ready(out)

    ref = reference(x, params, RESIDUAL_SCALE)
    assert out.shape == (BATCH, SEQ, D_MODEL)
    assert jnp.allclose(out, ref, atol=1e-4, rtol=1e-4), "mismatch vs JAX reference"

    # TODO(synk): training-mode dropout / DropPath (p > 0) not implemented; they
    # are identity in this inference kernel.
    print("KERNEL_OK")
</pallas_src>

<mosaic_0001>
module attributes {stable_mosaic.version = 11 : i64} {
  func.func @_encoder_layer_kernel(%arg0: memref<16x32xf32, #tpu.memory_space<vmem>>, %arg1: memref<168x128xf32, #tpu.memory_space<vmem>>, %arg2: memref<16x32xf32, #tpu.memory_space<vmem>>) attributes {dimension_semantics = [], scalar_prefetch = 0 : i64, scratch_operands = 0 : i64, tpu.core_type = #tpu.core_type<tc>} {
    %c0 = arith.constant 0 : index
    %c0_0 = arith.constant 0 : index
    %0 = vector.load %arg0[%c0, %c0_0] : memref<16x32xf32, #tpu.memory_space<vmem>>, vector<16x32xf32>
    %c0_1 = arith.constant 0 : index
    %c0_2 = arith.constant 0 : index
    %1 = vector.load %arg1[%c0_1, %c0_2] : memref<168x128xf32, #tpu.memory_space<vmem>>, vector<32x64xf32>
    %c0_3 = arith.constant 0 : index
    %c64 = arith.constant 64 : index
    %2 = vector.load %arg1[%c0_3, %c64] : memref<168x128xf32, #tpu.memory_space<vmem>>, vector<32x64xf32>
    %c32 = arith.constant 32 : index
    %c0_4 = arith.constant 0 : index
    %3 = vector.load %arg1[%c32, %c0_4] : memref<168x128xf32, #tpu.memory_space<vmem>>, vector<64x32xf32>
    %c32_5 = arith.constant 32 : index
    %c64_6 = arith.constant 64 : index
    %4 = vector.load %arg1[%c32_5, %c64_6] : memref<168x128xf32, #tpu.memory_space<vmem>>, vector<32x32xf32>
    %c96 = arith.constant 96 : index
    %c0_7 = arith.constant 0 : index
    %5 = vector.load %arg1[%c96, %c0_7] : memref<168x128xf32, #tpu.memory_space<vmem>>, vector<8x64xf32>
    %c104 = arith.constant 104 : index
    %c0_8 = arith.constant 0 : index
    %6 = vector.load %arg1[%c104, %c0_8] : memref<168x128xf32, #tpu.memory_space<vmem>>, vector<64x64xf32>
    %7 = vector.extract_strided_slice %5 {offsets = [0, 0], sizes = [1, 32], strides = [1, 1]} : vector<8x64xf32> to vector<1x32xf32>
    %8 = vector.extract_strided_slice %5 {offsets = [1, 0], sizes = [1, 32], strides = [1, 1]} : vector<8x64xf32> to vector<1x32xf32>
    %9 = vector.extract_strided_slice %5 {offsets = [2, 0], sizes = [1, 64], strides = [1, 1]} : vector<8x64xf32> to vector<1x64xf32>
    %10 = vector.extract_strided_slice %5 {offsets = [3, 0], sizes = [1, 32], strides = [1, 1]} : vector<8x64xf32> to vector<1x32xf32>
    %11 = vector.extract_strided_slice %5 {offsets = [4, 0], sizes = [1, 32], strides = [1, 1]} : vector<8x64xf32> to vector<1x32xf32>
    %12 = vector.extract_strided_slice %5 {offsets = [5, 0], sizes = [1, 32], strides = [1, 1]} : vector<8x64xf32> to vector<1x32xf32>
    %13 = vector.extract_strided_slice %5 {offsets = [6, 0], sizes = [1, 64], strides = [1, 1]} : vector<8x64xf32> to vector<1x64xf32>
    %14 = vector.extract_strided_slice %5 {offsets = [7, 0], sizes = [1, 32], strides = [1, 1]} : vector<8x64xf32> to vector<1x32xf32>
    %15 = vector.extract_strided_slice %6 {offsets = [0, 0], sizes = [64, 16], strides = [1, 1]} : vector<64x64xf32> to vector<64x16xf32>
    %16 = vector.extract_strided_slice %6 {offsets = [0, 16], sizes = [64, 16], strides = [1, 1]} : vector<64x64xf32> to vector<64x16xf32>
    %17 = vector.extract_strided_slice %6 {offsets = [0, 32], sizes = [64, 32], strides = [1, 1]} : vector<64x64xf32> to vector<64x32xf32>
    %cst = arith.constant dense<0.000000e+00> : vector<16xf32>
    %18 = vector.multi_reduction <add>, %0, %cst [1] : vector<16x32xf32> to vector<16xf32>
    %19 = vector.shape_cast %18 : vector<16xf32> to vector<16x1xf32>
    %cst_9 = arith.constant 3.200000e+01 : f32
    %20 = vector.broadcast %cst_9 : f32 to vector<16x1xf32>
    %21 = arith.divf %19, %20 : vector<16x1xf32>
    %22 = vector.broadcast %21 : vector<16x1xf32> to vector<16x32xf32>
    %23 = arith.subf %0, %22 : vector<16x32xf32>
    %24 = arith.mulf %23, %23 : vector<16x32xf32>
    %cst_10 = arith.constant dense<0.000000e+00> : vector<16xf32>
    %25 = vector.multi_reduction <add>, %24, %cst_10 [1] : vector<16x32xf32> to vector<16xf32>
    %26 = vector.shape_cast %25 : vector<16xf32> to vector<16x1xf32>
    %cst_11 = arith.constant 3.200000e+01 : f32
    %27 = vector.broadcast %cst_11 : f32 to vector<16x1xf32>
    %28 = arith.divf %26, %27 : vector<16x1xf32>
    %cst_12 = arith.constant 9.99999974E-6 : f32
    %29 = vector.broadcast %cst_12 : f32 to vector<16x1xf32>
    %30 = arith.addf %28, %29 : vector<16x1xf32>
    %31 = math.rsqrt %30 : vector<16x1xf32>
    %32 = vector.broadcast %31 : vector<16x1xf32> to vector<16x32xf32>
    %33 = arith.mulf %23, %32 : vector<16x32xf32>
    %34 = vector.broadcast %7 : vector<1x32xf32> to vector<16x32xf32>
    %35 = arith.mulf %33, %34 : vector<16x32xf32>
    %36 = vector.broadcast %8 : vector<1x32xf32> to vector<16x32xf32>
    %37 = arith.addf %35, %36 : vector<16x32xf32>
    %cst_13 = arith.constant dense<0.000000e+00> : vector<16x64xf32>
    %38 = tpu.matmul %37, %1, %cst_13 {dimension_numbers = #tpu.dot_dimension_numbers<[1], [0], [0], [1], [0, 0, 1, 1], [], []>} : vector<16x32xf32>, vector<32x64xf32>, vector<16x64xf32> -> vector<16x64xf32>
    %39 = vector.broadcast %9 : vector<1x64xf32> to vector<16x64xf32>
    %40 = arith.addf %38, %39 : vector<16x64xf32>
    %41 = vector.extract_strided_slice %40 {offsets = [0, 0], sizes = [16, 16], strides = [1, 1]} : vector<16x64xf32> to vector<16x16xf32>
    %42 = vector.extract_strided_slice %40 {offsets = [0, 16], sizes = [16, 16], strides = [1, 1]} : vector<16x64xf32> to vector<16x16xf32>
    %43 = vector.extract_strided_slice %40 {offsets = [0, 32], sizes = [16, 32], strides = [1, 1]} : vector<16x64xf32> to vector<16x32xf32>
    %44 = tpu.concatenate %41, %41, %41, %41 in 0 : vector<16x16xf32>, vector<16x16xf32>, vector<16x16xf32>, vector<16x16xf32> -> vector<64x16xf32>
    %45 = arith.mulf %44, %15 : vector<64x16xf32>
    %cst_14 = arith.constant dense<0.000000e+00> : vector<64x16xf32>
    %46 = tpu.matmul %45, %42, %cst_14 {dimension_numbers = #tpu.dot_dimension_numbers<[1], [1], [0], [0], [0, 0, 1, 0], [], []>} : vector<64x16xf32>, vector<16x16xf32>, vector<64x16xf32> -> vector<64x16xf32>
    %47 = arith.addf %46, %16 : vector<64x16xf32>
    %cst_15 = arith.constant dense<0xFF800000> : vector<64xf32>
    %48 = vector.multi_reduction <maximumf>, %47, %cst_15 [1] : vector<64x16xf32> to vector<64xf32>
    %49 = vector.shape_cast %48 : vector<64xf32> to vector<64x1xf32>
    %50 = vector.broadcast %49 : vector<64x1xf32> to vector<64x16xf32>
    %51 = arith.subf %47, %50 : vector<64x16xf32>
    %52 = math.exp %51 : vector<64x16xf32>
    %cst_16 = arith.constant dense<0.000000e+00> : vector<64xf32>
    %53 = vector.multi_reduction <add>, %52, %cst_16 [1] : vector<64x16xf32> to vector<64xf32>
    %54 = vector.shape_cast %53 : vector<64xf32> to vector<64x1xf32>
    %55 = vector.broadcast %54 : vector<64x1xf32> to vector<64x16xf32>
    %56 = arith.divf %52, %55 : vector<64x16xf32>
    %cst_17 = arith.constant dense<0.000000e+00> : vector<64x32xf32>
    %57 = tpu.matmul %56, %43, %cst_17 {dimension_numbers = #tpu.dot_dimension_numbers<[1], [0], [0], [1], [0, 0, 1, 1], [], []>} : vector<64x16xf32>, vector<16x32xf32>, vector<64x32xf32> -> vector<64x32xf32>
    %58 = arith.mulf %57, %17 : vector<64x32xf32>
    %cst_18 = arith.constant dense<0.000000e+00> : vector<64x32xf32>
    %59 = tpu.matmul %58, %4, %cst_18 {dimension_numbers = #tpu.dot_dimension_numbers<[1], [0], [0], [1], [0, 0, 1, 1], [], []>} : vector<64x32xf32>, vector<32x32xf32>, vector<64x32xf32> -> vector<64x32xf32>
    %60 = vector.extract_strided_slice %59 {offsets = [0, 0], sizes = [16, 32], strides = [1, 1]} : vector<64x32xf32> to vector<16x32xf32>
    %61 = vector.extract_strided_slice %59 {offsets = [16, 0], sizes = [16, 32], strides = [1, 1]} : vector<64x32xf32> to vector<16x32xf32>
    %62 = arith.addf %60, %61 : vector<16x32xf32>
    %63 = vector.extract_strided_slice %59 {offsets = [32, 0], sizes = [16, 32], strides = [1, 1]} : vector<64x32xf32> to vector<16x32xf32>
    %64 = arith.addf %62, %63 : vector<16x32xf32>
    %65 = vector.extract_strided_slice %59 {offsets = [48, 0], sizes = [16, 32], strides = [1, 1]} : vector<64x32xf32> to vector<16x32xf32>
    %66 = arith.addf %64, %65 : vector<16x32xf32>
    %67 = vector.broadcast %10 : vector<1x32xf32> to vector<16x32xf32>
    %68 = arith.addf %66, %67 : vector<16x32xf32>
    %cst_19 = arith.constant 5.000000e-01 : f32
    %69 = vector.broadcast %cst_19 : f32 to vector<16x32xf32>
    %70 = arith.mulf %68, %69 : vector<16x32xf32>
    %71 = arith.addf %0, %70 : vector<16x32xf32>
    %cst_20 = arith.constant dense<0.000000e+00> : vector<16xf32>
    %72 = vector.multi_reduction <add>, %71, %cst_20 [1] : vector<16x32xf32> to vector<16xf32>
    %73 = vector.shape_cast %72 : vector<16xf32> to vector<16x1xf32>
    %cst_21 = arith.constant 3.200000e+01 : f32
    %74 = vector.broadcast %cst_21 : f32 to vector<16x1xf32>
    %75 = arith.divf %73, %74 : vector<16x1xf32>
    %76 = vector.broadcast %75 : vector<16x1xf32> to vector<16x32xf32>
    %77 = arith.subf %71, %76 : vector<16x32xf32>
    %78 = arith.mulf %77, %77 : vector<16x32xf32>
    %cst_22 = arith.constant dense<0.000000e+00> : vector<16xf32>
    %79 = vector.multi_reduction <add>, %78, %cst_22 [1] : vector<16x32xf32> to vector<16xf32>
    %80 = vector.shape_cast %79 : vector<16xf32> to vector<16x1xf32>
    %cst_23 = arith.constant 3.200000e+01 : f32
    %81 = vector.broadcast %cst_23 : f32 to vector<16x1xf32>
    %82 = arith.divf %80, %81 : vector<16x1xf32>
    %cst_24 = arith.constant 9.99999974E-6 : f32
    %83 = vector.broadcast %cst_24 : f32 to vector<16x1xf32>
    %84 = arith.addf %82, %83 : vector<16x1xf32>
    %85 = math.rsqrt %84 : vector<16x1xf32>
    %86 = vector.broadcast %85 : vector<16x1xf32> to vector<16x32xf32>
    %87 = arith.mulf %77, %86 : vector<16x32xf32>
    %88 = vector.broadcast %11 : vector<1x32xf32> to vector<16x32xf32>
    %89 = arith.mulf %87, %88 : vector<16x32xf32>
    %90 = vector.broadcast %12 : vector<1x32xf32> to vector<16x32xf32>
    %91 = arith.addf %89, %90 : vector<16x32xf32>
    %cst_25 = arith.constant dense<0.000000e+00> : vector<16x64xf32>
    %92 = tpu.matmul %91, %2, %cst_25 {dimension_numbers = #tpu.dot_dimension_numbers<[1], [0], [0], [1], [0, 0, 1, 1], [], []>} : vector<16x32xf32>, vector<32x64xf32>, vector<16x64xf32> -> vector<16x64xf32>
    %93 = vector.broadcast %13 : vector<1x64xf32> to vector<16x64xf32>
    %94 = arith.addf %92, %93 : vector<16x64xf32>
    %cst_26 = arith.constant 5.000000e-01 : f32
    %95 = vector.broadcast %cst_26 : f32 to vector<16x64xf32>
    %96 = arith.mulf %95, %94 : vector<16x64xf32>
    %cst_27 = arith.constant 4.471500e-02 : f32
    %97 = vector.broadcast %cst_27 : f32 to vector<16x64xf32>
    %98 = arith.mulf %97, %94 : vector<16x64xf32>
    %99 = arith.mulf %98, %94 : vector<16x64xf32>
    %100 = arith.mulf %99, %94 : vector<16x64xf32>
    %101 = arith.addf %94, %100 : vector<16x64xf32>
    %cst_28 = arith.constant 0.797884583 : f32
    %102 = vector.broadcast %cst_28 : f32 to vector<16x64xf32>
    %103 = arith.mulf %102, %101 : vector<16x64xf32>
    %104 = math.tanh %103 : vector<16x64xf32>
    %cst_29 = arith.constant 1.000000e+00 : f32
    %105 = vector.broadcast %cst_29 : f32 to vector<16x64xf32>
    %106 = arith.addf %105, %104 : vector<16x64xf32>
    %107 = arith.mulf %96, %106 : vector<16x64xf32>
    %cst_30 = arith.constant dense<0.000000e+00> : vector<16x32xf32>
    %108 = tpu.matmul %107, %3, %cst_30 {dimension_numbers = #tpu.dot_dimension_numbers<[1], [0], [0], [1], [0, 0, 1, 1], [], []>} : vector<16x64xf32>, vector<64x32xf32>, vector<16x32xf32> -> vector<16x32xf32>
    %109 = vector.broadcast %14 : vector<1x32xf32> to vector<16x32xf32>
    %110 = arith.addf %108, %109 : vector<16x32xf32>
    %cst_31 = arith.constant 5.000000e-01 : f32
    %111 = vector.broadcast %cst_31 : f32 to vector<16x32xf32>
    %112 = arith.mulf %110, %111 : vector<16x32xf32>
    %113 = arith.addf %71, %112 : vector<16x32xf32>
    %c0_32 = arith.constant 0 : index
    %c0_33 = arith.constant 0 : index
    %114 = vector.load %arg2[%c0_32, %c0_33] : memref<16x32xf32, #tpu.memory_space<vmem>>, vector<16x32xf32>
    tpu.vector_store %arg2[%c0_32, %c0_33], %113 {strides = array<i32>} : memref<16x32xf32, #tpu.memory_space<vmem>>, vector<16x32xf32>,
    return
  }
}

</mosaic_0001>

<llo_original>
// kernel: forward.1
$region0: #{forward.1}
  #allocation0 [shape = 'u32[]', space=smem, size = 0x4, offset = 0x4, fixed_abs, tag = 'smem constant byte address 0x4 - core index']
  #allocation1 [shape = 'u32[144,128]{1,0:T(1,128)}', space=vmem, size = 0x12000, scoped, tag = 'internal scratch']
  %s0 = inlined_call_operand.hbm [shape: f32[16,32], index: 0, kind: input, shape index: {}]
  %s1 = inlined_call_operand.hbm [shape: f32[168,128], index: 1, kind: input, shape index: {}]
  %s2 = inlined_call_operand.hbm [shape: f32[16,32], index: 2, kind: output, shape index: {}]
  %s3 = sld [smem:[#allocation0]]
  $region26: #{forward.1} parent=0
    _
  %s5 = ssub.s32 1, %s3
  %s6 = scalar_select 0, %s5, %s3
  $region1: #{forward.1} parent=0
    #allocation2 [shape = 'u8[8192]{0}', space=vmem, size = 0x2000, scoped, tag = 'input window, operand 0, single buffered']
    #allocation3 [shape = 's32[1]{0}', space=sflag, size = 0x4, scoped, tag = 'scoped memory for forward.1']
    #allocation4 [shape = 's32[1]{0}', space=sflag, size = 0x4, scoped, tag = 'scoped memory for forward.1']
    #allocation5 [shape = 'u8[86016]{0}', space=vmem, size = 0x15000, scoped, tag = 'input window, operand 1, single buffered']
    #allocation6 [shape = 's32[1]{0}', space=sflag, size = 0x4, scoped, tag = 'scoped memory for forward.1']
    #allocation7 [shape = 'u8[8192]{0}', space=vmem, size = 0x2000, scoped, tag = 'output window, operand 0, single buffered']
    %7 = vsyncpa [#allocation3], 0
    %8 = vsyncpa [#allocation6], 0
    %9 = vsyncpa [#allocation4], 0
    // Predicated region
    $region2: #{forward.1} parent=1 // pred_check
      _
    $region3: #{forward.1} parent=1 // pred_check_branch
      %11 = sbr.rel (0) target = $region5
    $region4: #{forward.1} parent=1 // pred_region
      %s13 = ssub.s32 256, 256
      %14 = vsyncadd [#allocation3], %s13
      %s15 = sshll.u32 [#allocation2], 4
      %s16 = int_to_ptr.vmem [resolvable:$true] %s15
      %21 = dma.hbm_to_vmem [thread:$0]  %s0, 256, %s16, [#allocation3], 128, 128, 8
    $region5: #{forward.1} parent=1 // pred_fallthru
      _
    // Predicated region
    $region6: #{forward.1} parent=1 // pred_check
      _
    $region7: #{forward.1} parent=1 // pred_check_branch
      %23 = sbr.rel (0) target = $region9
    $region8: #{forward.1} parent=1 // pred_region
      %s25 = ssub.s32 2688, 2688
      %26 = vsyncadd [#allocation6], %s25
      %s27 = sshll.u32 [#allocation5], 4
      %s28 = int_to_ptr.vmem [resolvable:$true] %s27
      %33 = dma.hbm_to_vmem [thread:$0]  %s1, 2688, %s28, [#allocation6], 128, 128, 8
    $region9: #{forward.1} parent=1 // pred_fallthru
      _
    // Predicated region
    $region10: #{forward.1} parent=1 // pred_check
      _
    $region11: #{forward.1} parent=1 // pred_check_branch
      %35 = sbr.rel (0) target = $region13
    $region12: #{forward.1} parent=1 // pred_region
      %36 = dma.done [#allocation3], 256
    $region13: #{forward.1} parent=1 // pred_fallthru
      _
    // Predicated region
    $region14: #{forward.1} parent=1 // pred_check
      _
    $region15: #{forward.1} parent=1 // pred_check_branch
      %38 = sbr.rel (0) target = $region17
    $region16: #{forward.1} parent=1 // pred_region
      %39 = dma.done [#allocation6], 2688
    $region17: #{forward.1} parent=1 // pred_fallthru
      _
    %v40 = vld [vmem:[#allocation2] sm:$0xff]
    %v41 = vld [vmem:[#allocation2 + $0x8] sm:$0xff]
    %v42 = vld [vmem:[#allocation5] sm:$0xff]
    %v43 = vld [vmem:[#allocation5 + $0x8] sm:$0xff]
    %v44 = vld [vmem:[#allocation5 + $0x10] sm:$0xff]
    %v45 = vld [vmem:[#allocation5 + $0x18] sm:$0xff]
    %v46 = vld [vmem:[#allocation5 + $0x20] sm:$0xff]
    %v47 = vld [vmem:[#allocation5 + $0x28] sm:$0xff]
    %v48 = vld [vmem:[#allocation5 + $0x30] sm:$0xff]
    %v49 = vld [vmem:[#allocation5 + $0x38] sm:$0xff]
    %v50 = vld [vmem:[#allocation5 + $0x40] sm:$0xff]
    %v51 = vld [vmem:[#allocation5 + $0x48] sm:$0xff]
    %v52 = vld [vmem:[#allocation5 + $0x50] sm:$0xff]
    %v53 = vld [vmem:[#allocation5 + $0x58] sm:$0xff]
    %v54 = vld [vmem:[#allocation5 + $0x60] sm:$0xff]
    %v55 = vld [vmem:[#allocation5 + $0x68] sm:$0xff]
    %v56 = vld [vmem:[#allocation5 + $0x70] sm:$0xff]
    %v57 = vld [vmem:[#allocation5 + $0x78] sm:$0xff]
    %v58 = vld [vmem:[#allocation5 + $0x80] sm:$0xff]
    %v59 = vld [vmem:[#allocation5 + $0x88] sm:$0xff]
    %v60 = vld [vmem:[#allocation5 + $0x90] sm:$0xff]
    %v61 = vld [vmem:[#allocation5 + $0x98] sm:$0xff]
    %v62 = vld [vmem:[#allocation5 + $0xa0] sm:$0xff]
    %vm63 = vcmask 261120
    %v64 = vsel %vm63, %v40, 0.0
    %65 = vadd.xlane.f32.xlu0 %v64
    %v66 = vpop.xlane.xlu0 %65
    %v67 = vsel %vm63, %v41, 0.0
    %68 = vadd.xlane.f32.xlu0 %v67
    %v69 = vpop.xlane.xlu0 %68
    %v70 = vrcp.pop 32.0
    %v71 = vmul.f32 %v66, %v70
    %v72 = vmul.f32 %v69, %v70
    %v73 = vsub.f32 %v40, %v71
    %v74 = vsub.f32 %v41, %v72
    %v75 = vmul.f32 %v73, %v73
    %v76 = vmul.f32 %v74, %v74
    %v77 = vsel %vm63, %v75, 0.0
    %78 = vadd.xlane.f32.xlu0 %v77
    %v79 = vpop.xlane.xlu0 %78
    %v80 = vsel %vm63, %v76, 0.0
    %81 = vadd.xlane.f32.xlu0 %v80
    %v82 = vpop.xlane.xlu0 %81
    %v83 = vmul.f32 %v79, %v70
    %v84 = vmul.f32 %v82, %v70
    %v85 = vadd.f32 %v83, 1e-05
    %v86 = vadd.f32 %v84, 1e-05
    %v87 = vrsqrt.pop %v85
    %v88 = vrsqrt.pop %v86
    %v89 = vmul.f32 %v73, %v87
    %v90 = vmul.f32 %v74, %v88
    %v91 = vlaneseq
    %v92 = vshrl.u32 %v91, 7
    %v93 = vsub.s32 0, %v92
    %v94 = vrot.slane %v54, %v93
    %v95 = vmul.f32 %v89, %v94
    %v96 = vmul.f32 %v90, %v94
    %v97 = vlaneseq
    %v98 = vshrl.u32 %v97, 7
    %v99 = vsub.s32 1, %v98
    %v100 = vrot.slane %v54, %v99
    %v101 = vadd.f32 %v95, %v100
    %v102 = vadd.f32 %v96, %v100
    %v103 = vlaneseq
    %v104 = vshrl.u32 %v103, 7
    %v105 = vsub.s32 2, %v104
    %v106 = vrot.slane %v54, %v105
    %v108 = vsel %vm63, %v101, 0
    %v111 = vsel %vm63, %v102, 0
    %113 = vmatprep.subr.mxu0 0.0
    %114 = vmatpush1.msra.mxu0 0.0
    %115 = vmatprep.subr.mxu0 0.0
    %116 = vmatpush1.msra.mxu0 0.0
    %117 = vmatprep.subr.mxu0 0.0
    %118 = vmatpush1.msra.mxu0 0.0
    %119 = vmatprep.subr.mxu0 0.0
    %120 = vmatpush1.msra.mxu0 0.0
    %121 = vmatprep.subr.mxu0 0.0
    %122 = vmatpush1.msra.mxu0 0.0
    %123 = vmatprep.subr.mxu0 0.0
    %124 = vmatpush1.msra.mxu0 0.0
    %125 = vmatprep.subr.mxu0 0.0
    %126 = vmatpush1.msra.mxu0 0.0
    %127 = vmatprep.subr.mxu0 0.0
    %128 = vmatpush1.msra.mxu0 0.0
    %129 = vmatprep.subr.mxu0 0.0
    %130 = vmatpush1.msra.mxu0 0.0
    %131 = vmatprep.subr.mxu0 0.0
    %132 = vmatpush1.msra.mxu0 0.0
    %133 = vmatprep.subr.mxu0 0.0
    %134 = vmatpush1.msra.mxu0 0.0
    %135 = vmatprep.subr.mxu0 0.0
    %136 = vmatpush1.msra.mxu0 0.0
    %137 = vmatprep.subr.mxu0 0.0
    %138 = vmatpush1.msra.mxu0 %v45
    %139 = vmatprep.subr.mxu0 0.0
    %140 = vmatpush1.msra.mxu0 %v44
    %141 = vmatprep.subr.mxu0 0.0
    %142 = vmatpush1.msra.mxu0 %v43
    %143 = vmatprep.subr.mxu0 0.0
    %144 = vmatpush1.msra.mxu0 %v42
    %145 = vmatprep.subr.mxu0 0.0
    %146 = vmatpush2.msra.mxu0 0.0
    %147 = vmatprep.subr.mxu0 0.0
    %148 = vmatpush2.msra.mxu0 0.0
    %149 = vmatprep.subr.mxu0 0.0
    %150 = vmatpush2.msra.mxu0 0.0
    %151 = vmatprep.subr.mxu0 0.0
    %152 = vmatpush2.msra.mxu0 0.0
    %153 = vmatprep.subr.mxu0 0.0
    %154 = vmatpush2.msra.mxu0 0.0
    %155 = vmatprep.subr.mxu0 0.0
    %156 = vmatpush2.msra.mxu0 0.0
    %157 = vmatprep.subr.mxu0 0.0
    %158 = vmatpush2.msra.mxu0 0.0
    %159 = vmatprep.subr.mxu0 0.0
    %160 = vmatpush2.msra.mxu0 0.0
    %161 = vmatprep.subr.mxu0 0.0
    %162 = vmatpush2.msra.mxu0 0.0
    %163 = vmatprep.subr.mxu0 0.0
    %164 = vmatpush2.msra.mxu0 0.0
    %165 = vmatprep.subr.mxu0 0.0
    %166 = vmatpush2.msra.mxu0 0.0
    %167 = vmatprep.subr.mxu0 0.0
    %168 = vmatpush2.msra.mxu0 0.0
    %169 = vmatprep.subr.mxu0 0.0
    %170 = vmatpush2.msra.mxu0 0.0
    %171 = vmatprep.subr.mxu0 0.0
    %172 = vmatpush2.msra.mxu0 0.0
    %173 = vmatprep.subr.mxu0 0.0
    %174 = vmatpush2.msra.mxu0 0.0
    %175 = vmatprep.subr.mxu0 0.0
    %176 = vmatpush2.msra.mxu0 0.0
    %177 = vmatprep.mubr.f32.mxu0 0.0
    %178 = vmatmul.mubr.f32.gmra.mxu0 %v108
    %v179 = vpop.f32.mrf.mxu0
    %v180 = vadd.f32 %v106, %v179
    %v181 = vpop.f32.mrf.mxu0
    %182 = vmatprep.mubr.f32.mxu0 0.0
    %183 = vmatmul.mubr.f32.gmra.mxu0 %v111
    %v184 = vpop.f32.mrf.mxu0
    %v185 = vadd.f32 %v106, %v184
    %v186 = vpop.f32.mrf.mxu0
    %187 = vdwg.mxu0
    %v188 = vmul.f32 %v180, %v55
    %v189 = vmul.f32 %v185, %v56
    %v190 = vmul.f32 %v180, %v57
    %v191 = vmul.f32 %v185, %v58
    %v192 = vmul.f32 %v180, %v59
    %v193 = vmul.f32 %v185, %v60
    %v194 = vmul.f32 %v180, %v61
    %v195 = vmul.f32 %v185, %v62
    %198 = vrot.lane.b32.xlu0 %v180, 112
    %v199 = vpop.permute.xlu0 %198
    %200 = vrot.lane.b32.xlu0 %v185, 112
    %v201 = vpop.permute.xlu0 %200
    %210 = vrot.lane.b32.xlu0 %v55, 112
    %v211 = vpop.permute.xlu0 %210
    %212 = vrot.lane.b32.xlu0 %v56, 112
    %v213 = vpop.permute.xlu0 %212
    %214 = vrot.lane.b32.xlu0 %v57, 112
    %v215 = vpop.permute.xlu0 %214
    %216 = vrot.lane.b32.xlu0 %v58, 112
    %v217 = vpop.permute.xlu0 %216
    %218 = vrot.lane.b32.xlu0 %v59, 112
    %v219 = vpop.permute.xlu0 %218
    %220 = vrot.lane.b32.xlu0 %v60, 112
    %v221 = vpop.permute.xlu0 %220
    %222 = vrot.lane.b32.xlu0 %v61, 112
    %v223 = vpop.permute.xlu0 %222
    %224 = vrot.lane.b32.xlu0 %v62, 112
    %v225 = vpop.permute.xlu0 %224
    %vm234 = vcmask 130048
    %v236 = vsel %vm234, %v188, 0
    %v239 = vsel %vm234, %v189, 0
    %v242 = vsel %vm234, %v190, 0
    %v245 = vsel %vm234, %v191, 0
    %v248 = vsel %vm234, %v192, 0
    %v251 = vsel %vm234, %v193, 0
    %v254 = vsel %vm234, %v194, 0
    %v257 = vsel %vm234, %v195, 0
    %v259 = vsel %vm234, %v199, 0
    %v261 = vsel %vm234, %v201, 0
    %263 = vmatprep.subr.mxu0 0.0
    %264 = vmatpush1.xpose.msra.mxu0 0.0
    %265 = vmatprep.subr.mxu0 0.0
    %266 = vmatpush1.xpose.msra.mxu0 0.0
    %267 = vmatprep.subr.mxu0 0.0
    %268 = vmatpush1.xpose.msra.mxu0 0.0
    %269 = vmatprep.subr.mxu0 0.0
    %270 = vmatpush1.xpose.msra.mxu0 0.0
    %271 = vmatprep.subr.mxu0 0.0
    %272 = vmatpush1.xpose.msra.mxu0 0.0
    %273 = vmatprep.subr.mxu0 0.0
    %274 = vmatpush1.xpose.msra.mxu0 0.0
    %275 = vmatprep.subr.mxu0 0.0
    %276 = vmatpush1.xpose.msra.mxu0 0.0
    %277 = vmatprep.subr.mxu0 0.0
    %278 = vmatpush1.xpose.msra.mxu0 0.0
    %279 = vmatprep.subr.mxu0 0.0
    %280 = vmatpush1.xpose.msra.mxu0 0.0
    %281 = vmatprep.subr.mxu0 0.0
    %282 = vmatpush1.xpose.msra.mxu0 0.0
    %283 = vmatprep.subr.mxu0 0.0
    %284 = vmatpush1.xpose.msra.mxu0 0.0
    %285 = vmatprep.subr.mxu0 0.0
    %286 = vmatpush1.xpose.msra.mxu0 0.0
    %287 = vmatprep.subr.mxu0 0.0
    %288 = vmatpush1.xpose.msra.mxu0 0.0
    %289 = vmatprep.subr.mxu0 0.0
    %290 = vmatpush1.xpose.msra.mxu0 0.0
    %291 = vmatprep.subr.mxu0 0.0
    %292 = vmatpush1.xpose.msra.mxu0 %v261
    %293 = vmatprep.subr.mxu0 0.0
    %294 = vmatpush1.xpose.msra.mxu0 %v259
    %295 = vmatprep.subr.mxu0 0.0
    %296 = vmatpush2.xpose.msra.mxu0 0.0
    %297 = vmatprep.subr.mxu0 0.0
    %298 = vmatpush2.xpose.msra.mxu0 0.0
    %299 = vmatprep.subr.mxu0 0.0
    %300 = vmatpush2.xpose.msra.mxu0 0.0
    %301 = vmatprep.subr.mxu0 0.0
    %302 = vmatpush2.xpose.msra.mxu0 0.0
    %303 = vmatprep.subr.mxu0 0.0
    %304 = vmatpush2.xpose.msra.mxu0 0.0
    %305 = vmatprep.subr.mxu0 0.0
    %306 = vmatpush2.xpose.msra.mxu0 0.0
    %307 = vmatprep.subr.mxu0 0.0
    %308 = vmatpush2.xpose.msra.mxu0 0.0
    %309 = vmatprep.subr.mxu0 0.0
    %310 = vmatpush2.xpose.msra.mxu0 0.0
    %311 = vmatprep.subr.mxu0 0.0
    %312 = vmatpush2.xpose.msra.mxu0 0.0
    %313 = vmatprep.subr.mxu0 0.0
    %314 = vmatpush2.xpose.msra.mxu0 0.0
    %315 = vmatprep.subr.mxu0 0.0
    %316 = vmatpush2.xpose.msra.mxu0 0.0
    %317 = vmatprep.subr.mxu0 0.0
    %318 = vmatpush2.xpose.msra.mxu0 0.0
    %319 = vmatprep.subr.mxu0 0.0
    %320 = vmatpush2.xpose.msra.mxu0 0.0
    %321 = vmatprep.subr.mxu0 0.0
    %322 = vmatpush2.xpose.msra.mxu0 0.0
    %323 = vmatprep.subr.mxu0 0.0
    %324 = vmatpush2.xpose.msra.mxu0 0.0
    %325 = vmatprep.subr.mxu0 0.0
    %326 = vmatpush2.xpose.msra.mxu0 0.0
    %327 = vmatprep.mubr.f32.mxu0 0.0
    %328 = vmatmul.mubr.f32.gmra.mxu0 %v236
    %v329 = vpop.f32.mrf.mxu0
    %v330 = vadd.f32 %v211, %v329
    %v331 = vpop.f32.mrf.mxu0
    %332 = vmatprep.mubr.f32.mxu0 0.0
    %333 = vmatmul.mubr.f32.gmra.mxu0 %v239
    %v334 = vpop.f32.mrf.mxu0
    %v335 = vadd.f32 %v213, %v334
    %v336 = vpop.f32.mrf.mxu0
    %337 = vmatprep.mubr.f32.mxu0 0.0
    %338 = vmatmul.mubr.f32.gmra.mxu0 %v242
    %v339 = vpop.f32.mrf.mxu0
    %v340 = vadd.f32 %v215, %v339
    %v341 = vpop.f32.mrf.mxu0
    %342 = vmatprep.mubr.f32.mxu0 0.0
    %343 = vmatmul.mubr.f32.gmra.mxu0 %v245
    %v344 = vpop.f32.mrf.mxu0
    %v345 = vadd.f32 %v217, %v344
    %v346 = vpop.f32.mrf.mxu0
    %347 = vmatprep.mubr.f32.mxu0 0.0
    %348 = vmatmul.mubr.f32.gmra.mxu0 %v248
    %v349 = vpop.f32.mrf.mxu0
    %v350 = vadd.f32 %v219, %v349
    %v351 = vpop.f32.mrf.mxu0
    %352 = vmatprep.mubr.f32.mxu0 0.0
    %353 = vmatmul.mubr.f32.gmra.mxu0 %v251
    %v354 = vpop.f32.mrf.mxu0
    %v355 = vadd.f32 %v221, %v354
    %v356 = vpop.f32.mrf.mxu0
    %357 = vmatprep.mubr.f32.mxu0 0.0
    %358 = vmatmul.mubr.f32.gmra.mxu0 %v254
    %v359 = vpop.f32.mrf.mxu0
    %v360 = vadd.f32 %v223, %v359
    %v361 = vpop.f32.mrf.mxu0
    %362 = vmatprep.mubr.f32.mxu0 0.0
    %363 = vmatmul.mubr.f32.gmra.mxu0 %v257
    %v364 = vpop.f32.mrf.mxu0
    %v365 = vadd.f32 %v225, %v364
    %v366 = vpop.f32.mrf.mxu0
    %367 = vdwg.mxu0
    %v368 = vsel %vm234, %v330, -inf
    %369 = vmax.xlane.f32.xlu0 %v368
    %v370 = vpop.xlane.xlu0 %369
    %v371 = vsel %vm234, %v335, -inf
    %372 = vmax.xlane.f32.xlu0 %v371
    %v373 = vpop.xlane.xlu0 %372
    %v374 = vsel %vm234, %v340, -inf
    %375 = vmax.xlane.f32.xlu0 %v374
    %v376 = vpop.xlane.xlu0 %375
    %v377 = vsel %vm234, %v345, -inf
    %378 = vmax.xlane.f32.xlu0 %v377
    %v379 = vpop.xlane.xlu0 %378
    %v380 = vsel %vm234, %v350, -inf
    %381 = vmax.xlane.f32.xlu0 %v380
    %v382 = vpop.xlane.xlu0 %381
    %v383 = vsel %vm234, %v355, -inf
    %384 = vmax.xlane.f32.xlu0 %v383
    %v385 = vpop.xlane.xlu0 %384
    %v386 = vsel %vm234, %v360, -inf
    %387 = vmax.xlane.f32.xlu0 %v386
    %v388 = vpop.xlane.xlu0 %387
    %v389 = vsel %vm234, %v365, -inf
    %390 = vmax.xlane.f32.xlu0 %v389
    %v391 = vpop.xlane.xlu0 %390
    %v392 = vsub.f32 %v330, %v370
    %v393 = vsub.f32 %v335, %v373
    %v394 = vsub.f32 %v340, %v376
    %v395 = vsub.f32 %v345, %v379
    %v396 = vsub.f32 %v350, %v382
    %v397 = vsub.f32 %v355, %v385
    %v398 = vsub.f32 %v360, %v388
    %v399 = vsub.f32 %v365, %v391
    %v400 = vmul.f32 %v392, 1.442695
    %v401 = vpow.pop %v400
    %v402 = vmul.f32 %v393, 1.442695
    %v403 = vpow.pop %v402
    %v404 = vmul.f32 %v394, 1.442695
    %v405 = vpow.pop %v404
    %v406 = vmul.f32 %v395, 1.442695
    %v407 = vpow.pop %v406
    %v408 = vmul.f32 %v396, 1.442695
    %v409 = vpow.pop %v408
    %v410 = vmul.f32 %v397, 1.442695
    %v411 = vpow.pop %v410
    %v412 = vmul.f32 %v398, 1.442695
    %v413 = vpow.pop %v412
    %v414 = vmul.f32 %v399, 1.442695
    %v415 = vpow.pop %v414
    %v416 = vsel %vm234, %v401, 0.0
    %417 = vadd.xlane.f32.xlu0 %v416
    %v418 = vpop.xlane.xlu0 %417
    %v419 = vsel %vm234, %v403, 0.0
    %420 = vadd.xlane.f32.xlu0 %v419
    %v421 = vpop.xlane.xlu0 %420
    %v422 = vsel %vm234, %v405, 0.0
    %423 = vadd.xlane.f32.xlu0 %v422
    %v424 = vpop.xlane.xlu0 %423
    %v425 = vsel %vm234, %v407, 0.0
    %426 = vadd.xlane.f32.xlu0 %v425
    %v427 = vpop.xlane.xlu0 %426
    %v428 = vsel %vm234, %v409, 0.0
    %429 = vadd.xlane.f32.xlu0 %v428
    %v430 = vpop.xlane.xlu0 %429
    %v431 = vsel %vm234, %v411, 0.0
    %432 = vadd.xlane.f32.xlu0 %v431
    %v433 = vpop.xlane.xlu0 %432
    %v434 = vsel %vm234, %v413, 0.0
    %435 = vadd.xlane.f32.xlu0 %v434
    %v436 = vpop.xlane.xlu0 %435
    %v437 = vsel %vm234, %v415, 0.0
    %438 = vadd.xlane.f32.xlu0 %v437
    %v439 = vpop.xlane.xlu0 %438
    %v440 = vrcp.pop %v418
    %v441 = vmul.f32 %v401, %v440
    %v442 = vrcp.pop %v421
    %v443 = vmul.f32 %v403, %v442
    %v444 = vrcp.pop %v424
    %v445 = vmul.f32 %v405, %v444
    %v446 = vrcp.pop %v427
    %v447 = vmul.f32 %v407, %v446
    %v448 = vrcp.pop %v430
    %v449 = vmul.f32 %v409, %v448
    %v450 = vrcp.pop %v433
    %v451 = vmul.f32 %v411, %v450
    %v452 = vrcp.pop %v436
    %v453 = vmul.f32 %v413, %v452
    %v454 = vrcp.pop %v439
    %v455 = vmul.f32 %v415, %v454
    %456 = vrot.lane.b32.xlu0 %v180, 96
    %v457 = vpop.permute.xlu0 %456
    %458 = vrot.lane.b32.xlu0 %v185, 96
    %v459 = vpop.permute.xlu0 %458
    %v463 = vsel %vm234, %v441, 0
    %v466 = vsel %vm234, %v443, 0
    %v469 = vsel %vm234, %v445, 0
    %v472 = vsel %vm234, %v447, 0
    %v475 = vsel %vm234, %v449, 0
    %v478 = vsel %vm234, %v451, 0
    %v481 = vsel %vm234, %v453, 0
    %v484 = vsel %vm234, %v455, 0
    %486 = vmatprep.subr.mxu0 0.0
    %487 = vmatpush1.msra.mxu0 0.0
    %488 = vmatprep.subr.mxu0 0.0
    %489 = vmatpush1.msra.mxu0 0.0
    %490 = vmatprep.subr.mxu0 0.0
    %491 = vmatpush1.msra.mxu0 0.0
    %492 = vmatprep.subr.mxu0 0.0
    %493 = vmatpush1.msra.mxu0 0.0
    %494 = vmatprep.subr.mxu0 0.0
    %495 = vmatpush1.msra.mxu0 0.0
    %496 = vmatprep.subr.mxu0 0.0
    %497 = vmatpush1.msra.mxu0 0.0
    %498 = vmatprep.subr.mxu0 0.0
    %499 = vmatpush1.msra.mxu0 0.0
    %500 = vmatprep.subr.mxu0 0.0
    %501 = vmatpush1.msra.mxu0 0.0
    %502 = vmatprep.subr.mxu0 0.0
    %503 = vmatpush1.msra.mxu0 0.0
    %504 = vmatprep.subr.mxu0 0.0
    %505 = vmatpush1.msra.mxu0 0.0
    %506 = vmatprep.subr.mxu0 0.0
    %507 = vmatpush1.msra.mxu0 0.0
    %508 = vmatprep.subr.mxu0 0.0
    %509 = vmatpush1.msra.mxu0 0.0
    %510 = vmatprep.subr.mxu0 0.0
    %511 = vmatpush1.msra.mxu0 0.0
    %512 = vmatprep.subr.mxu0 0.0
    %513 = vmatpush1.msra.mxu0 0.0
    %514 = vmatprep.subr.mxu0 0.0
    %515 = vmatpush1.msra.mxu0 %v459
    %516 = vmatprep.subr.mxu0 0.0
    %517 = vmatpush1.msra.mxu0 %v457
    %518 = vmatprep.subr.mxu0 0.0
    %519 = vmatpush2.msra.mxu0 0.0
    %520 = vmatprep.subr.mxu0 0.0
    %521 = vmatpush2.msra.mxu0 0.0
    %522 = vmatprep.subr.mxu0 0.0
    %523 = vmatpush2.msra.mxu0 0.0
    %524 = vmatprep.subr.mxu0 0.0
    %525 = vmatpush2.msra.mxu0 0.0
    %526 = vmatprep.subr.mxu0 0.0
    %527 = vmatpush2.msra.mxu0 0.0
    %528 = vmatprep.subr.mxu0 0.0
    %529 = vmatpush2.msra.mxu0 0.0
    %530 = vmatprep.subr.mxu0 0.0
    %531 = vmatpush2.msra.mxu0 0.0
    %532 = vmatprep.subr.mxu0 0.0
    %533 = vmatpush2.msra.mxu0 0.0
    %534 = vmatprep.subr.mxu0 0.0
    %535 = vmatpush2.msra.mxu0 0.0
    %536 = vmatprep.subr.mxu0 0.0
    %537 = vmatpush2.msra.mxu0 0.0
    %538 = vmatprep.subr.mxu0 0.0
    %539 = vmatpush2.msra.mxu0 0.0
    %540 = vmatprep.subr.mxu0 0.0
    %541 = vmatpush2.msra.mxu0 0.0
    %542 = vmatprep.subr.mxu0 0.0
    %543 = vmatpush2.msra.mxu0 0.0
    %544 = vmatprep.subr.mxu0 0.0
    %545 = vmatpush2.msra.mxu0 0.0
    %546 = vmatprep.subr.mxu0 0.0
    %547 = vmatpush2.msra.mxu0 0.0
    %548 = vmatprep.subr.mxu0 0.0
    %549 = vmatpush2.msra.mxu0 0.0
    %550 = vmatprep.mubr.f32.mxu0 0.0
    %551 = vmatmul.mubr.f32.gmra.mxu0 %v463
    %v552 = vpop.f32.mrf.mxu0
    %v553 = vadd.f32 0.0, %v552
    %v554 = vpop.f32.mrf.mxu0
    %555 = vmatprep.mubr.f32.mxu0 0.0
    %556 = vmatmul.mubr.f32.gmra.mxu0 %v466
    %v557 = vpop.f32.mrf.mxu0
    %v558 = vadd.f32 0.0, %v557
    %v559 = vpop.f32.mrf.mxu0
    %560 = vmatprep.mubr.f32.mxu0 0.0
    %561 = vmatmul.mubr.f32.gmra.mxu0 %v469
    %v562 = vpop.f32.mrf.mxu0
    %v563 = vadd.f32 0.0, %v562
    %v564 = vpop.f32.mrf.mxu0
    %565 = vmatprep.mubr.f32.mxu0 0.0
    %566 = vmatmul.mubr.f32.gmra.mxu0 %v472
    %v567 = vpop.f32.mrf.mxu0
    %v568 = vadd.f32 0.0, %v567
    %v569 = vpop.f32.mrf.mxu0
    %570 = vmatprep.mubr.f32.mxu0 0.0
    %571 = vmatmul.mubr.f32.gmra.mxu0 %v475
    %v572 = vpop.f32.mrf.mxu0
    %v573 = vadd.f32 0.0, %v572
    %v574 = vpop.f32.mrf.mxu0
    %575 = vmatprep.mubr.f32.mxu0 0.0
    %576 = vmatmul.mubr.f32.gmra.mxu0 %v478
    %v577 = vpop.f32.mrf.mxu0
    %v578 = vadd.f32 0.0, %v577
    %v579 = vpop.f32.mrf.mxu0
    %580 = vmatprep.mubr.f32.mxu0 0.0
    %581 = vmatmul.mubr.f32.gmra.mxu0 %v481
    %v582 = vpop.f32.mrf.mxu0
    %v583 = vadd.f32 0.0, %v582
    %v584 = vpop.f32.mrf.mxu0
    %585 = vmatprep.mubr.f32.mxu0 0.0
    %586 = vmatmul.mubr.f32.gmra.mxu0 %v484
    %v587 = vpop.f32.mrf.mxu0
    %v588 = vadd.f32 0.0, %v587
    %v589 = vpop.f32.mrf.mxu0
    %590 = vdwg.mxu0
    %591 = vrot.lane.b32.xlu0 %v55, 96
    %v592 = vpop.permute.xlu0 %591
    %593 = vrot.lane.b32.xlu0 %v56, 96
    %v594 = vpop.permute.xlu0 %593
    %595 = vrot.lane.b32.xlu0 %v57, 96
    %v596 = vpop.permute.xlu0 %595
    %597 = vrot.lane.b32.xlu0 %v58, 96
    %v598 = vpop.permute.xlu0 %597
    %599 = vrot.lane.b32.xlu0 %v59, 96
    %v600 = vpop.permute.xlu0 %599
    %601 = vrot.lane.b32.xlu0 %v60, 96
    %v602 = vpop.permute.xlu0 %601
    %603 = vrot.lane.b32.xlu0 %v61, 96
    %v604 = vpop.permute.xlu0 %603
    %605 = vrot.lane.b32.xlu0 %v62, 96
    %v606 = vpop.permute.xlu0 %605
    %v615 = vmul.f32 %v553, %v592
    %v616 = vmul.f32 %v558, %v594
    %v617 = vmul.f32 %v563, %v596
    %v618 = vmul.f32 %v568, %v598
    %v619 = vmul.f32 %v573, %v600
    %v620 = vmul.f32 %v578, %v602
    %v621 = vmul.f32 %v583, %v604
    %v622 = vmul.f32 %v588, %v606
    %627 = vrot.lane.b32.xlu0 %v46, 64
    %v628 = vpop.permute.xlu0 %627
    %629 = vrot.lane.b32.xlu0 %v47, 64
    %v630 = vpop.permute.xlu0 %629
    %631 = vrot.lane.b32.xlu0 %v48, 64
    %v632 = vpop.permute.xlu0 %631
    %633 = vrot.lane.b32.xlu0 %v49, 64
    %v634 = vpop.permute.xlu0 %633
    %v640 = vsel %vm63, %v615, 0
    %v643 = vsel %vm63, %v616, 0
    %v646 = vsel %vm63, %v617, 0
    %v649 = vsel %vm63, %v618, 0
    %v652 = vsel %vm63, %v619, 0
    %v655 = vsel %vm63, %v620, 0
    %v658 = vsel %vm63, %v621, 0
    %v661 = vsel %vm63, %v622, 0
    %663 = vmatprep.subr.mxu0 0.0
    %664 = vmatpush1.msra.mxu0 0.0
    %665 = vmatprep.subr.mxu0 0.0
    %666 = vmatpush1.msra.mxu0 0.0
    %667 = vmatprep.subr.mxu0 0.0
    %668 = vmatpush1.msra.mxu0 0.0
    %669 = vmatprep.subr.mxu0 0.0
    %670 = vmatpush1.msra.mxu0 0.0
    %671 = vmatprep.subr.mxu0 0.0
    %672 = vmatpush1.msra.mxu0 0.0
    %673 = vmatprep.subr.mxu0 0.0
    %674 = vmatpush1.msra.mxu0 0.0
    %675 = vmatprep.subr.mxu0 0.0
    %676 = vmatpush1.msra.mxu0 0.0
    %677 = vmatprep.subr.mxu0 0.0
    %678 = vmatpush1.msra.mxu0 0.0
    %679 = vmatprep.subr.mxu0 0.0
    %680 = vmatpush1.msra.mxu0 0.0
    %681 = vmatprep.subr.mxu0 0.0
    %682 = vmatpush1.msra.mxu0 0.0
    %683 = vmatprep.subr.mxu0 0.0
    %684 = vmatpush1.msra.mxu0 0.0
    %685 = vmatprep.subr.mxu0 0.0
    %686 = vmatpush1.msra.mxu0 0.0
    %687 = vmatprep.subr.mxu0 0.0
    %688 = vmatpush1.msra.mxu0 %v634
    %689 = vmatprep.subr.mxu0 0.0
    %690 = vmatpush1.msra.mxu0 %v632
    %691 = vmatprep.subr.mxu0 0.0
    %692 = vmatpush1.msra.mxu0 %v630
    %693 = vmatprep.subr.mxu0 0.0
    %694 = vmatpush1.msra.mxu0 %v628
    %695 = vmatprep.subr.mxu0 0.0
    %696 = vmatpush2.msra.mxu0 0.0
    %697 = vmatprep.subr.mxu0 0.0
    %698 = vmatpush2.msra.mxu0 0.0
    %699 = vmatprep.subr.mxu0 0.0
    %700 = vmatpush2.msra.mxu0 0.0
    %701 = vmatprep.subr.mxu0 0.0
    %702 = vmatpush2.msra.mxu0 0.0
    %703 = vmatprep.subr.mxu0 0.0
    %704 = vmatpush2.msra.mxu0 0.0
    %705 = vmatprep.subr.mxu0 0.0
    %706 = vmatpush2.msra.mxu0 0.0
    %707 = vmatprep.subr.mxu0 0.0
    %708 = vmatpush2.msra.mxu0 0.0
    %709 = vmatprep.subr.mxu0 0.0
    %710 = vmatpush2.msra.mxu0 0.0
    %711 = vmatprep.subr.mxu0 0.0
    %712 = vmatpush2.msra.mxu0 0.0
    %713 = vmatprep.subr.mxu0 0.0
    %714 = vmatpush2.msra.mxu0 0.0
    %715 = vmatprep.subr.mxu0 0.0
    %716 = vmatpush2.msra.mxu0 0.0
    %717 = vmatprep.subr.mxu0 0.0
    %718 = vmatpush2.msra.mxu0 0.0
    %719 = vmatprep.subr.mxu0 0.0
    %720 = vmatpush2.msra.mxu0 0.0
    %721 = vmatprep.subr.mxu0 0.0
    %722 = vmatpush2.msra.mxu0 0.0
    %723 = vmatprep.subr.mxu0 0.0
    %724 = vmatpush2.msra.mxu0 0.0
    %725 = vmatprep.subr.mxu0 0.0
    %726 = vmatpush2.msra.mxu0 0.0
    %727 = vmatprep.mubr.f32.mxu0 0.0
    %728 = vmatmul.mubr.f32.gmra.mxu0 %v640
    %v729 = vpop.f32.mrf.mxu0
    %v730 = vadd.f32 0.0, %v729
    %v731 = vpop.f32.mrf.mxu0
    %732 = vmatprep.mubr.f32.mxu0 0.0
    %733 = vmatmul.mubr.f32.gmra.mxu0 %v643
    %v734 = vpop.f32.mrf.mxu0
    %v735 = vadd.f32 0.0, %v734
    %v736 = vpop.f32.mrf.mxu0
    %737 = vmatprep.mubr.f32.mxu0 0.0
    %738 = vmatmul.mubr.f32.gmra.mxu0 %v646
    %v739 = vpop.f32.mrf.mxu0
    %v740 = vadd.f32 0.0, %v739
    %v741 = vpop.f32.mrf.mxu0
    %742 = vmatprep.mubr.f32.mxu0 0.0
    %743 = vmatmul.mubr.f32.gmra.mxu0 %v649
    %v744 = vpop.f32.mrf.mxu0
    %v745 = vadd.f32 0.0, %v744
    %v746 = vpop.f32.mrf.mxu0
    %747 = vmatprep.mubr.f32.mxu0 0.0
    %748 = vmatmul.mubr.f32.gmra.mxu0 %v652
    %v749 = vpop.f32.mrf.mxu0
    %v750 = vadd.f32 0.0, %v749
    %v751 = vpop.f32.mrf.mxu0
    %752 = vmatprep.mubr.f32.mxu0 0.0
    %753 = vmatmul.mubr.f32.gmra.mxu0 %v655
    %v754 = vpop.f32.mrf.mxu0
    %v755 = vadd.f32 0.0, %v754
    %v756 = vpop.f32.mrf.mxu0
    %757 = vmatprep.mubr.f32.mxu0 0.0
    %758 = vmatmul.mubr.f32.gmra.mxu0 %v658
    %v759 = vpop.f32.mrf.mxu0
    %v760 = vadd.f32 0.0, %v759
    %v761 = vpop.f32.mrf.mxu0
    %762 = vmatprep.mubr.f32.mxu0 0.0
    %763 = vmatmul.mubr.f32.gmra.mxu0 %v661
    %v764 = vpop.f32.mrf.mxu0
    %v765 = vadd.f32 0.0, %v764
    %v766 = vpop.f32.mrf.mxu0
    %767 = vdwg.mxu0
    %v768 = vadd.f32 %v730, %v740
    %v769 = vadd.f32 %v735, %v745
    %v770 = vadd.f32 %v768, %v750
    %v771 = vadd.f32 %v769, %v755
    %v772 = vadd.f32 %v770, %v760
    %v773 = vadd.f32 %v771, %v765
    %v774 = vlaneseq
    %v775 = vshrl.u32 %v774, 7
    %v776 = vsub.s32 3, %v775
    %v777 = vrot.slane %v54, %v776
    %v778 = vadd.f32 %v772, %v777
    %v779 = vadd.f32 %v773, %v777
    %v780 = vmul.f32 %v778, 0.5
    %v781 = vmul.f32 %v779, 0.5
    %v782 = vadd.f32 %v40, %v780
    %v783 = vadd.f32 %v41, %v781
    %v784 = vsel %vm63, %v782, 0.0
    %785 = vadd.xlane.f32.xlu0 %v784
    %v786 = vpop.xlane.xlu0 %785
    %v787 = vsel %vm63, %v783, 0.0
    %788 = vadd.xlane.f32.xlu0 %v787
    %v789 = vpop.xlane.xlu0 %788
    %v790 = vmul.f32 %v786, %v70
    %v791 = vmul.f32 %v789, %v70
    %v792 = vsub.f32 %v782, %v790
    %v793 = vsub.f32 %v783, %v791
    %v794 = vmul.f32 %v792, %v792
    %v795 = vmul.f32 %v793, %v793
    %v796 = vsel %vm63, %v794, 0.0
    %797 = vadd.xlane.f32.xlu0 %v796
    %v798 = vpop.xlane.xlu0 %797
    %v799 = vsel %vm63, %v795, 0.0
    %800 = vadd.xlane.f32.xlu0 %v799
    %v801 = vpop.xlane.xlu0 %800
    %v802 = vmul.f32 %v798, %v70
    %v803 = vmul.f32 %v801, %v70
    %v804 = vadd.f32 %v802, 1e-05
    %v805 = vadd.f32 %v803, 1e-05
    %v806 = vrsqrt.pop %v804
    %v807 = vrsqrt.pop %v805
    %v808 = vmul.f32 %v792, %v806
    %v809 = vmul.f32 %v793, %v807
    %v810 = vlaneseq
    %v811 = vshrl.u32 %v810, 7
    %v812 = vsub.s32 4, %v811
    %v813 = vrot.slane %v54, %v812
    %v814 = vmul.f32 %v808, %v813
    %v815 = vmul.f32 %v809, %v813
    %v816 = vlaneseq
    %v817 = vshrl.u32 %v816, 7
    %v818 = vsub.s32 5, %v817
    %v819 = vrot.slane %v54, %v818
    %v820 = vadd.f32 %v814, %v819
    %v821 = vadd.f32 %v815, %v819
    %v822 = vlaneseq
    %v823 = vshrl.u32 %v822, 7
    %v824 = vsub.s32 6, %v823
    %v825 = vrot.slane %v54, %v824
    %830 = vrot.lane.b32.xlu0 %v42, 64
    %v831 = vpop.permute.xlu0 %830
    %832 = vrot.lane.b32.xlu0 %v43, 64
    %v833 = vpop.permute.xlu0 %832
    %834 = vrot.lane.b32.xlu0 %v44, 64
    %v835 = vpop.permute.xlu0 %834
    %836 = vrot.lane.b32.xlu0 %v45, 64
    %v837 = vpop.permute.xlu0 %836
    %v843 = vsel %vm63, %v820, 0
    %v846 = vsel %vm63, %v821, 0
    %848 = vmatprep.subr.mxu0 0.0
    %849 = vmatpush1.msra.mxu0 0.0
    %850 = vmatprep.subr.mxu0 0.0
    %851 = vmatpush1.msra.mxu0 0.0
    %852 = vmatprep.subr.mxu0 0.0
    %853 = vmatpush1.msra.mxu0 0.0
    %854 = vmatprep.subr.mxu0 0.0
    %855 = vmatpush1.msra.mxu0 0.0
    %856 = vmatprep.subr.mxu0 0.0
    %857 = vmatpush1.msra.mxu0 0.0
    %858 = vmatprep.subr.mxu0 0.0
    %859 = vmatpush1.msra.mxu0 0.0
    %860 = vmatprep.subr.mxu0 0.0
    %861 = vmatpush1.msra.mxu0 0.0
    %862 = vmatprep.subr.mxu0 0.0
    %863 = vmatpush1.msra.mxu0 0.0
    %864 = vmatprep.subr.mxu0 0.0
    %865 = vmatpush1.msra.mxu0 0.0
    %866 = vmatprep.subr.mxu0 0.0
    %867 = vmatpush1.msra.mxu0 0.0
    %868 = vmatprep.subr.mxu0 0.0
    %869 = vmatpush1.msra.mxu0 0.0
    %870 = vmatprep.subr.mxu0 0.0
    %871 = vmatpush1.msra.mxu0 0.0
    %872 = vmatprep.subr.mxu0 0.0
    %873 = vmatpush1.msra.mxu0 %v837
    %874 = vmatprep.subr.mxu0 0.0
    %875 = vmatpush1.msra.mxu0 %v835
    %876 = vmatprep.subr.mxu0 0.0
    %877 = vmatpush1.msra.mxu0 %v833
    %878 = vmatprep.subr.mxu0 0.0
    %879 = vmatpush1.msra.mxu0 %v831
    %880 = vmatprep.subr.mxu0 0.0
    %881 = vmatpush2.msra.mxu0 0.0
    %882 = vmatprep.subr.mxu0 0.0
    %883 = vmatpush2.msra.mxu0 0.0
    %884 = vmatprep.subr.mxu0 0.0
    %885 = vmatpush2.msra.mxu0 0.0
    %886 = vmatprep.subr.mxu0 0.0
    %887 = vmatpush2.msra.mxu0 0.0
    %888 = vmatprep.subr.mxu0 0.0
    %889 = vmatpush2.msra.mxu0 0.0
    %890 = vmatprep.subr.mxu0 0.0
    %891 = vmatpush2.msra.mxu0 0.0
    %892 = vmatprep.subr.mxu0 0.0
    %893 = vmatpush2.msra.mxu0 0.0
    %894 = vmatprep.subr.mxu0 0.0
    %895 = vmatpush2.msra.mxu0 0.0
    %896 = vmatprep.subr.mxu0 0.0
    %897 = vmatpush2.msra.mxu0 0.0
    %898 = vmatprep.subr.mxu0 0.0
    %899 = vmatpush2.msra.mxu0 0.0
    %900 = vmatprep.subr.mxu0 0.0
    %901 = vmatpush2.msra.mxu0 0.0
    %902 = vmatprep.subr.mxu0 0.0
    %903 = vmatpush2.msra.mxu0 0.0
    %904 = vmatprep.subr.mxu0 0.0
    %905 = vmatpush2.msra.mxu0 0.0
    %906 = vmatprep.subr.mxu0 0.0
    %907 = vmatpush2.msra.mxu0 0.0
    %908 = vmatprep.subr.mxu0 0.0
    %909 = vmatpush2.msra.mxu0 0.0
    %910 = vmatprep.subr.mxu0 0.0
    %911 = vmatpush2.msra.mxu0 0.0
    %912 = vmatprep.mubr.f32.mxu0 0.0
    %913 = vmatmul.mubr.f32.gmra.mxu0 %v843
    %v914 = vpop.f32.mrf.mxu0
    %v915 = vadd.f32 %v825, %v914
    %v916 = vpop.f32.mrf.mxu0
    %917 = vmatprep.mubr.f32.mxu0 0.0
    %918 = vmatmul.mubr.f32.gmra.mxu0 %v846
    %v919 = vpop.f32.mrf.mxu0
    %v920 = vadd.f32 %v825, %v919
    %v921 = vpop.f32.mrf.mxu0
    %922 = vdwg.mxu0
    %v923 = vmul.f32 %v915, 0.5
    %v924 = vmul.f32 %v920, 0.5
    %v925 = vmul.f32 %v915, 0.044715
    %v926 = vmul.f32 %v920, 0.044715
    %v927 = vmul.f32 %v925, %v915
    %v928 = vmul.f32 %v926, %v920
    %v929 = vmul.f32 %v927, %v915
    %v930 = vmul.f32 %v928, %v920
    %v931 = vadd.f32 %v915, %v929
    %v932 = vadd.f32 %v920, %v930
    %v933 = vmul.f32 %v931, 0.7978846
    %v934 = vmul.f32 %v932, 0.7978846
    %v935 = vtanh.pop %v933
    %v936 = vtanh.pop %v934
    %v937 = vadd.f32 %v935, 1.0
    %v938 = vadd.f32 %v936, 1.0
    %v939 = vmul.f32 %v923, %v937
    %v940 = vmul.f32 %v924, %v938
    %v941 = vlaneseq
    %v942 = vshrl.u32 %v941, 7
    %v943 = vsub.s32 7, %v942
    %v944 = vrot.slane %v54, %v943
    %vm945 = vcmask 523264
    %v947 = vsel %vm945, %v939, 0
    %v950 = vsel %vm945, %v940, 0
    %952 = vmatprep.subr.mxu0 0.0
    %953 = vmatpush1.msra.mxu0 0.0
    %954 = vmatprep.subr.mxu0 0.0
    %955 = vmatpush1.msra.mxu0 0.0
    %956 = vmatprep.subr.mxu0 0.0
    %957 = vmatpush1.msra.mxu0 0.0
    %958 = vmatprep.subr.mxu0 0.0
    %959 = vmatpush1.msra.mxu0 0.0
    %960 = vmatprep.subr.mxu0 0.0
    %961 = vmatpush1.msra.mxu0 0.0
    %962 = vmatprep.subr.mxu0 0.0
    %963 = vmatpush1.msra.mxu0 0.0
    %964 = vmatprep.subr.mxu0 0.0
    %965 = vmatpush1.msra.mxu0 0.0
    %966 = vmatprep.subr.mxu0 0.0
    %967 = vmatpush1.msra.mxu0 0.0
    %968 = vmatprep.subr.mxu0 0.0
    %969 = vmatpush1.msra.mxu0 %v53
    %970 = vmatprep.subr.mxu0 0.0
    %971 = vmatpush1.msra.mxu0 %v52
    %972 = vmatprep.subr.mxu0 0.0
    %973 = vmatpush1.msra.mxu0 %v51
    %974 = vmatprep.subr.mxu0 0.0
    %975 = vmatpush1.msra.mxu0 %v50
    %976 = vmatprep.subr.mxu0 0.0
    %977 = vmatpush1.msra.mxu0 %v49
    %978 = vmatprep.subr.mxu0 0.0
    %979 = vmatpush1.msra.mxu0 %v48
    %980 = vmatprep.subr.mxu0 0.0
    %981 = vmatpush1.msra.mxu0 %v47
    %982 = vmatprep.subr.mxu0 0.0
    %983 = vmatpush1.msra.mxu0 %v46
    %984 = vmatprep.subr.mxu0 0.0
    %985 = vmatpush2.msra.mxu0 0.0
    %986 = vmatprep.subr.mxu0 0.0
    %987 = vmatpush2.msra.mxu0 0.0
    %988 = vmatprep.subr.mxu0 0.0
    %989 = vmatpush2.msra.mxu0 0.0
    %990 = vmatprep.subr.mxu0 0.0
    %991 = vmatpush2.msra.mxu0 0.0
    %992 = vmatprep.subr.mxu0 0.0
    %993 = vmatpush2.msra.mxu0 0.0
    %994 = vmatprep.subr.mxu0 0.0
    %995 = vmatpush2.msra.mxu0 0.0
    %996 = vmatprep.subr.mxu0 0.0
    %997 = vmatpush2.msra.mxu0 0.0
    %998 = vmatprep.subr.mxu0 0.0
    %999 = vmatpush2.msra.mxu0 0.0
    %1000 = vmatprep.subr.mxu0 0.0
    %1001 = vmatpush2.msra.mxu0 0.0
    %1002 = vmatprep.subr.mxu0 0.0
    %1003 = vmatpush2.msra.mxu0 0.0
    %1004 = vmatprep.subr.mxu0 0.0
    %1005 = vmatpush2.msra.mxu0 0.0
    %1006 = vmatprep.subr.mxu0 0.0
    %1007 = vmatpush2.msra.mxu0 0.0
    %1008 = vmatprep.subr.mxu0 0.0
    %1009 = vmatpush2.msra.mxu0 0.0
    %1010 = vmatprep.subr.mxu0 0.0
    %1011 = vmatpush2.msra.mxu0 0.0
    %1012 = vmatprep.subr.mxu0 0.0
    %1013 = vmatpush2.msra.mxu0 0.0
    %1014 = vmatprep.subr.mxu0 0.0
    %1015 = vmatpush2.msra.mxu0 0.0
    %1016 = vmatprep.mubr.f32.mxu0 0.0
    %1017 = vmatmul.mubr.f32.gmra.mxu0 %v947
    %v1018 = vpop.f32.mrf.mxu0
    %v1019 = vadd.f32 %v944, %v1018
    %v1020 = vpop.f32.mrf.mxu0
    %1021 = vmatprep.mubr.f32.mxu0 0.0
    %1022 = vmatmul.mubr.f32.gmra.mxu0 %v950
    %v1023 = vpop.f32.mrf.mxu0
    %v1024 = vadd.f32 %v944, %v1023
    %v1025 = vpop.f32.mrf.mxu0
    %1026 = vdwg.mxu0
    %v1027 = vmul.f32 %v1019, 0.5
    %v1028 = vmul.f32 %v1024, 0.5
    %v1029 = vadd.f32 %v782, %v1027
    %v1030 = vadd.f32 %v783, %v1028
    %1031 = vst.msk [vmem:[#allocation7] sm:$0xff] %vm63, %v1029
    %1032 = vst.msk [vmem:[#allocation7 + $0x8] sm:$0xff] %vm63, %v1030
    // Predicated region
    $region18: #{forward.1} parent=1 // pred_check
      _
    $region19: #{forward.1} parent=1 // pred_check_branch
      %1034 = sbr.rel (0) target = $region21
    $region20: #{forward.1} parent=1 // pred_region
      %s1036 = ssub.s32 256, 256
      %1037 = vsyncadd [#allocation4], %s1036
      %s1038 = sshll.u32 [#allocation7], 4
      %s1039 = int_to_ptr.vmem [resolvable:$true] %s1038
      %1044 = dma.vmem_to_hbm [thread:$0]  %s1039, 256, %s2, [#allocation4], 128, 128, 8
    $region21: #{forward.1} parent=1 // pred_fallthru
      _
    // Predicated region
    $region22: #{forward.1} parent=1 // pred_check
      _
    $region23: #{forward.1} parent=1 // pred_check_branch
      %1046 = sbr.rel (0) target = $region25
    $region24: #{forward.1} parent=1 // pred_region
      %1047 = dma.done [#allocation4], 256
    $region25: #{forward.1} parent=1 // pred_fallthru
      _
    %1048 = vsyncpa [#allocation3], 1
    %1049 = vsyncpa [#allocation6], 1
    %1050 = vsyncpa [#allocation4], 1

</llo_original>
